<compile_context>
chip_gen: v5e
topology: v5e:2x2
jax: 0.10.0
libtpu: 0.0.40
codegen_flags: <defaults>
</compile_context>

<pallas_src>
import numpy as np
import jax
import jax.numpy as jnp
from jax.experimental import pallas as pl
from jax.experimental.pallas import tpu as pltpu

PAD_IDX = 0


# ----------------------------------------------------------------------------
# Pallas kernel: time-tiled sum-pool (accumulated in VMEM scratch) ->
# mean (divide by token count) -> fused Linear into a lane-padded output.
# Grid = (batch tiles [parallel], time tiles [arbitrary reduction]).
# ----------------------------------------------------------------------------
def _ffnn_kernel(emb_ref, len_ref, w_ref, b_ref, out_ref, acc_ref):
    t = pl.program_id(1)

    @pl.when(t == 0)
    def _():
        acc_ref[...] = jnp.zeros_like(acc_ref)

    # Sum this (bB, tT, E) time tile.  Positions appended by the wrapper's
    # T-padding were zero-filled and contribute nothing; real padding tokens
    # keep their stored embedding (faithful to nn.Embedding(_weight=...)).
    acc_ref[...] += jnp.sum(emb_ref[...], axis=1)

    @pl.when(t == pl.num_programs(1) - 1)
    def _():
        agg = acc_ref[...] / len_ref[...]              # (bB, E) / (bB, 1)
        out_ref[...] = (
            jnp.dot(agg, w_ref[...], preferred_element_type=jnp.float32)
            + b_ref[...]
        )


# ----------------------------------------------------------------------------
# One-time parameter re-layout (NOT per forward call): Linear weight (C, E)
# -> lane-padded (E, C_pad) with C_pad a multiple of 128; bias -> (1, C_pad).
# ----------------------------------------------------------------------------
def _round_up(x, m):
    return (x + m - 1) // m * m


def prepare_params(params):
    w1 = jnp.asarray(params['w1'], jnp.float32)        # (C, E)
    b1 = jnp.asarray(params['b1'], jnp.float32)        # (C,)
    C, E = w1.shape
    C_pad = _round_up(max(C, 1), 128)
    w_pad = jnp.zeros((E, C_pad), jnp.float32).at[:, :C].set(w1.T)
    b_pad = jnp.zeros((1, C_pad), jnp.float32).at[0, :C].set(b1)
    return {
        'embedding': jnp.asarray(params['embedding'], jnp.float32),
        'w_pad': w_pad,
        'b_pad': b_pad,
        'num_classes': C,
    }


# ----------------------------------------------------------------------------
# Wrapper: embedding gather (glue) + padding to tile boundaries + pallas_call.
# ----------------------------------------------------------------------------
def feed_forward_nn_forward(inputs, prepared, padding_idx=PAD_IDX,
                            emb_agg='mean', batch_tile=8, time_tile=8):
    inputs = inputs.astype(jnp.int32)
    B, T = inputs.shape
    emb_w = prepared['embedding']
    E = emb_w.shape[1]
    C_pad = prepared['w_pad'].shape[1]
    C = prepared['num_classes']

    # Embedding gather stays in the wrapper (data-dependent row gather has no
    # rectangular BlockSpec form).  Padding rows keep their stored embedding,
    # matching nn.Embedding(_weight=...), which does not zero padding_idx.
    emb = jnp.take(emb_w, inputs, axis=0)               # (B, T, E) f32

    if emb_agg == 'mean':
        lengths = jnp.sum((inputs != padding_idx).astype(jnp.float32), axis=1)
        # Guard all-padding rows (and batch-padding rows) against divide-by-0.
        len_col = jnp.maximum(lengths, 1.0).reshape(B, 1)
    else:                                                # 'sum'
        len_col = jnp.ones((B, 1), jnp.float32)

    bB = batch_tile
    tT = time_tile
    B_pad = _round_up(B, bB)
    T_pad = _round_up(T, tT)
    emb = jnp.pad(emb, ((0, B_pad - B), (0, T_pad - T), (0, 0)))
    len_col = jnp.pad(len_col, ((0, B_pad - B), (0, 0)), constant_values=1.0)

    grid = (B_pad // bB, T_pad // tT)
    out = pl.pallas_call(
        _ffnn_kernel,
        out_shape=jax.ShapeDtypeStruct((B_pad, C_pad), jnp.float32),
        grid_spec=pltpu.PrefetchScalarGridSpec(
            num_scalar_prefetch=0,
            grid=grid,
            in_specs=[
                pl.BlockSpec((bB, tT, E), lambda i, t: (i, t, 0)),   # emb tile
                pl.BlockSpec((bB, 1), lambda i, t: (i, 0)),          # lengths
                pl.BlockSpec((E, C_pad), lambda i, t: (0, 0)),       # W (E,Cp)
                pl.BlockSpec((1, C_pad), lambda i, t: (0, 0)),       # bias
            ],
            out_specs=pl.BlockSpec((bB, C_pad), lambda i, t: (i, 0)),
            scratch_shapes=[pltpu.VMEM((bB, E), jnp.float32)],
        ),
        compiler_params=pltpu.CompilerParams(
            dimension_semantics=("parallel", "arbitrary")),
    )(emb, len_col, prepared['w_pad'], prepared['b_pad'])
    return out[:B, :C]


# ----------------------------------------------------------------------------
# Deterministic parameter init (shapes follow FeedForwardNN.__init__ defaults:
# pretrained embedding weights, Linear(input_size=E, num_classes), no hidden).
# ----------------------------------------------------------------------------
def init_params(key, vocab, E, C):
    ks = jax.random.split(key, 3)
    emb = jax.random.normal(ks[0], (vocab, E), jnp.float32)
    # NOTE: padding row intentionally NOT zeroed — nn.Embedding keeps the
    # user-supplied _weight row for padding_idx, and the module sums it.
    k_lin = 1.0 / np.sqrt(E)
    w1 = jax.random.uniform(ks[1], (C, E), jnp.float32, -k_lin, k_lin)
    b1 = jax.random.uniform(ks[2], (C,), jnp.float32, -k_lin, k_lin)
    return {'embedding': emb, 'w1': w1, 'b1': b1}


# ----------------------------------------------------------------------------
# Pure-numpy reference mirroring the PyTorch forward (for verification).
# ----------------------------------------------------------------------------
def reference_forward_np(inputs, params, padding_idx=PAD_IDX, emb_agg='mean'):
    inputs = np.asarray(inputs)
    emb_w = np.asarray(params['embedding'], np.float32)
    w1 = np.asarray(params['w1'], np.float32)
    b1 = np.asarray(params['b1'], np.float32)
    agg = emb_w[inputs].sum(axis=1)                      # (B, E), pads included
    if emb_agg == 'mean':
        lengths = (inputs != padding_idx).sum(axis=1).astype(np.float32)
        agg = agg / lengths[:, None]
    return agg @ w1.T + b1


if __name__ == "__main__":
    B, T, VOCAB, E, C = 4, 20, 64, 32, 4

    key = jax.random.PRNGKey(0)
    k_tok, k_par = jax.random.split(key)

    tok = jax.random.randint(k_tok, (B, T), 1, VOCAB)
    seq_lens = jnp.array([20, 13, 7, 1], jnp.int32)      # trailing padding
    mask = jnp.arange(T)[None, :] < seq_lens[:, None]
    inputs = jnp.where(mask, tok, PAD_IDX).astype(jnp.int32)

    params = init_params(k_par, VOCAB, E, C)
    prepared = prepare_params(params)                    # one-time re-layout

    out = feed_forward_nn_forward(inputs, prepared)
    out = jax.block_until_ready(out)

    ref = reference_forward_np(inputs, params)
    np.testing.assert_allclose(np.asarray(out), ref, rtol=2e-4, atol=2e-4)

    print("KERNEL_OK")
</pallas_src>

<mosaic_0001>
module attributes {stable_mosaic.version = 11 : i64} {
  func.func @_ffnn_kernel(%arg0: i32, %arg1: i32, %arg2: memref<8x8x32xf32, #tpu.memory_space<vmem>>, %arg3: memref<8x1xf32, #tpu.memory_space<vmem>>, %arg4: memref<32x128xf32, #tpu.memory_space<vmem>>, %arg5: memref<1x128xf32, #tpu.memory_space<vmem>>, %arg6: memref<8x128xf32, #tpu.memory_space<vmem>>, %arg7: memref<8x32xf32, #tpu.memory_space<vmem>>) attributes {dimension_semantics = [#tpu.dimension_semantics<parallel>, #tpu.dimension_semantics<arbitrary>], iteration_bounds = array<i64: 1, 3>, scalar_prefetch = 0 : i64, scratch_operands = 1 : i64, tpu.core_type = #tpu.core_type<tc>, window_params = [{transform_indices = @transform_0, window_bounds = array<i64: 8, 8, 32>}, {transform_indices = @transform_1, window_bounds = array<i64: 8, 1>}, {pipeline_mode = #tpu.pipeline_mode<synchronous>, transform_indices = @transform_2, window_bounds = array<i64: 32, 128>}, {pipeline_mode = #tpu.pipeline_mode<synchronous>, transform_indices = @transform_3, window_bounds = array<i64: 1, 128>}, {transform_indices = @transform_4, window_bounds = array<i64: 8, 128>}]} {
    %c0_i32 = arith.constant 0 : i32
    %0 = arith.cmpi eq, %arg1, %c0_i32 : i32
    %1 = arith.extui %0 : i1 to i32
    %c0_i32_0 = arith.constant 0 : i32
    %2 = arith.cmpi ne, %1, %c0_i32_0 : i32
    scf.if %2 {
      %cst_8 = arith.constant 0.000000e+00 : f32
      %11 = vector.broadcast %cst_8 : f32 to vector<8x32xf32>
      %c0_9 = arith.constant 0 : index
      %c0_10 = arith.constant 0 : index
      %12 = vector.load %arg7[%c0_9, %c0_10] : memref<8x32xf32, #tpu.memory_space<vmem>>, vector<8x32xf32>
      tpu.vector_store %arg7[%c0_9, %c0_10], %11 {strides = array<i32>} : memref<8x32xf32, #tpu.memory_space<vmem>>, vector<8x32xf32>,
    } else {
    }
    %c0 = arith.constant 0 : index
    %c0_1 = arith.constant 0 : index
    %3 = vector.load %arg7[%c0, %c0_1] : memref<8x32xf32, #tpu.memory_space<vmem>>, vector<8x32xf32>
    %c0_2 = arith.constant 0 : index
    %c0_3 = arith.constant 0 : index
    %c0_4 = arith.constant 0 : index
    %4 = vector.load %arg2[%c0_2, %c0_3, %c0_4] : memref<8x8x32xf32, #tpu.memory_space<vmem>>, vector<8x8x32xf32>
    %cst = arith.constant dense<0.000000e+00> : vector<8x32xf32>
    %5 = vector.multi_reduction <add>, %4, %cst [1] : vector<8x8x32xf32> to vector<8x32xf32>
    %6 = arith.addf %3, %5 : vector<8x32xf32>
    %c0_5 = arith.constant 0 : index
    %c0_6 = arith.constant 0 : index
    %7 = vector.load %arg7[%c0_5, %c0_6] : memref<8x32xf32, #tpu.memory_space<vmem>>, vector<8x32xf32>
    tpu.vector_store %arg7[%c0_5, %c0_6], %6 {strides = array<i32>} : memref<8x32xf32, #tpu.memory_space<vmem>>, vector<8x32xf32>,
    %c2_i32 = arith.constant 2 : i32
    %8 = arith.cmpi eq, %arg1, %c2_i32 : i32
    %9 = arith.extui %8 : i1 to i32
    %c0_i32_7 = arith.constant 0 : i32
    %10 = arith.cmpi ne, %9, %c0_i32_7 : i32
    scf.if %10 {
      %c0_8 = arith.constant 0 : index
      %c0_9 = arith.constant 0 : index
      %11 = vector.load %arg7[%c0_8, %c0_9] : memref<8x32xf32, #tpu.memory_space<vmem>>, vector<8x32xf32>
      %c0_10 = arith.constant 0 : index
      %c0_11 = arith.constant 0 : index
      %12 = vector.load %arg3[%c0_10, %c0_11] : memref<8x1xf32, #tpu.memory_space<vmem>>, vector<8x1xf32>
      %13 = vector.broadcast %12 : vector<8x1xf32> to vector<8x32xf32>
      %14 = arith.divf %11, %13 : vector<8x32xf32>
      %c0_12 = arith.constant 0 : index
      %c0_13 = arith.constant 0 : index
      %15 = vector.load %arg4[%c0_12, %c0_13] : memref<32x128xf32, #tpu.memory_space<vmem>>, vector<32x128xf32>
      %cst_14 = arith.constant dense<0.000000e+00> : vector<8x128xf32>
      %16 = tpu.matmul %14, %15, %cst_14 {dimension_numbers = #tpu.dot_dimension_numbers<[1], [0], [0], [1], [0, 0, 1, 1], [], []>} : vector<8x32xf32>, vector<32x128xf32>, vector<8x128xf32> -> vector<8x128xf32>
      %c0_15 = arith.constant 0 : index
      %c0_16 = arith.constant 0 : index
      %17 = vector.load %arg5[%c0_15, %c0_16] : memref<1x128xf32, #tpu.memory_space<vmem>>, vector<1x128xf32>
      %18 = vector.broadcast %17 : vector<1x128xf32> to vector<8x128xf32>
      %19 = arith.addf %16, %18 : vector<8x128xf32>
      %c0_17 = arith.constant 0 : index
      %c0_18 = arith.constant 0 : index
      %20 = vector.load %arg6[%c0_17, %c0_18] : memref<8x128xf32, #tpu.memory_space<vmem>>, vector<8x128xf32>
      tpu.vector_store %arg6[%c0_17, %c0_18], %19 {strides = array<i32>} : memref<8x128xf32, #tpu.memory_space<vmem>>, vector<8x128xf32>,
    } else {
    }
    return
  }
  func.func @transform_0(%arg0: i32, %arg1: i32) -> (i32, i32, i32) {
    %c0_i32 = arith.constant 0 : i32
    %c0_i32_0 = arith.constant 0 : i32
    return %arg0, %arg1, %c0_i32 : i32, i32, i32
  }
  func.func @transform_1(%arg0: i32, %arg1: i32) -> (i32, i32) {
    %c0_i32 = arith.constant 0 : i32
    %c0_i32_0 = arith.constant 0 : i32
    return %arg0, %c0_i32 : i32, i32
  }
  func.func @transform_2(%arg0: i32, %arg1: i32) -> (i32, i32) {
    %c0_i32 = arith.constant 0 : i32
    %c0_i32_0 = arith.constant 0 : i32
    %c0_i32_1 = arith.constant 0 : i32
    return %c0_i32, %c0_i32_0 : i32, i32
  }
  func.func @transform_3(%arg0: i32, %arg1: i32) -> (i32, i32) {
    %c0_i32 = arith.constant 0 : i32
    %c0_i32_0 = arith.constant 0 : i32
    %c0_i32_1 = arith.constant 0 : i32
    return %c0_i32, %c0_i32_0 : i32, i32
  }
  func.func @transform_4(%arg0: i32, %arg1: i32) -> (i32, i32) {
    %c0_i32 = arith.constant 0 : i32
    %c0_i32_0 = arith.constant 0 : i32
    return %arg0, %c0_i32 : i32, i32
  }
}

</mosaic_0001>

<llo_original>
// kernel: tpu_custom_call.1
$region0: #{tpu_custom_call.1}
  #allocation0 [shape = 'u32[]', space=smem, size = 0x4, offset = 0x4, fixed_abs, tag = 'smem constant byte address 0x4 - core index']
  #allocation1 [shape = 'u32[72,128]{1,0:T(1,128)}', space=vmem, size = 0x9000, scoped, tag = 'internal scratch']
  #allocation2 [shape = 'f32[8,32]{1,0:T(8,128)}', space=vmem, size = 0x1000, scoped, tag = 'scratch operand']
  %s0 = inlined_call_operand.hbm [shape: f32[8,24,32], index: 0, kind: input, shape index: {}]
  %s1 = inlined_call_operand.vmem [shape: f32[8,1], index: 1, kind: input, shape index: {}]
  %s2 = inlined_call_operand.hbm [shape: f32[32,128], index: 2, kind: input, shape index: {}]
  %s3 = inlined_call_operand.vmem [shape: f32[1,128], index: 3, kind: input, shape index: {}]
  %s4 = inlined_call_operand.hbm [shape: f32[8,128], index: 4, kind: output, shape index: {}]
  %s5 = sld [smem:[#allocation0]]
  $region65: #{tpu_custom_call.1} parent=0
    _
  %s7 = ssub.s32 1, %s5
  %s8 = scalar_select 0, %s7, %s5
  $region1: #{tpu_custom_call.1} parent=0
    #allocation3 [shape = 'u8[65536]{0}', space=vmem, size = 0x10000, scoped, tag = 'input window, operand 0']
    #allocation4 [shape = 's32[2]{0}', space=sflag, size = 0x8, scoped, tag = 'scoped memory for tpu_custom_call.1']
    #allocation5 [shape = 's32[2]{0}', space=sflag, size = 0x8, scoped, tag = 'scoped memory for tpu_custom_call.1']
    #allocation6 [shape = 'u8[16384]{0}', space=vmem, size = 0x4000, scoped, tag = 'input window, operand 2, single buffered']
    #allocation7 [shape = 's32[1]{0}', space=sflag, size = 0x4, scoped, tag = 'scoped memory for tpu_custom_call.1']
    #allocation8 [shape = 'u8[4096]{0}', space=vmem, size = 0x1000, scoped, tag = 'output window, operand 0, single buffered']
    %9 = vsyncpa [#allocation4], 0
    %s10 = scalar_lea.sflag [#allocation4], 1
    %11 = vsyncpa %s10, 0
    %12 = vsyncpa [#allocation7], 0
    %13 = vsyncpa [#allocation5], 0
    loop: start=0, step=1, limit=5
    $region2: #{tpu_custom_call.1} parent=1 // loop_pre_header
      _
    $region3: #{tpu_custom_call.1} parent=1 // loop_header
      %s15 = sphi 0, %s19
      %p16 = scmp.ge.s32.totalorder %s15, 5
      %s22 = sphi 0, %s34
      %s23 = sphi 0, %s30
      %s24 = sphi 0, %s22
      %s25 = sphi 0, %s23
      %s26 = sphi 0, %s24
      %s27 = sphi 0, %s25
      %s39 = sphi 0, %s41
      %s42 = sphi 0, %s39
      %s43 = sphi 0, %s42
      %s59 = sphi 0, %s43
      %s65 = sphi 0, %s67
      %s68 = sphi 0, %s65
      %s69 = sphi 0, %s68
      %s85 = sphi 0, %s69
      %s89 = sphi 0, %s89
      %s91 = sphi 0, %s89
      %s92 = sphi 0, %s91
      %s106 = sphi 0, %s92
      %s110 = sphi 0, %s110
      %s112 = sphi 0, %s110
      %s113 = sphi 0, %s112
      %s127 = sphi 0, %s113
      %s133 = sphi 0, %s135
      %s136 = sphi 0, %s133
      %s137 = sphi 0, %s136
      %s153 = sphi 0, %s137
    $region4: #{tpu_custom_call.1} parent=1 // loop_header_branch
      %18 = sbr.rel (%p16) target = $region8
    $region5: #{tpu_custom_call.1} parent=1 // loop_body
      %s20 = ssub.s32 %s15, 1
      %s21 = ssub.s32 %s15, 2
      %s28 = sadd.s32 1, %s23
      %p29 = scmp.ge.s32.totalorder %s28, 3
      %s30 = scalar_select %p29, 0, %s28
      %s31 = sadd.s32 1, %s22
      %s32 = scalar_select %p29, %s31, %s22
      %p33 = scmp.ge.s32.totalorder %s32, 1
      %s34 = scalar_select %p33, 0, %s32
      %s35 = ssub.s32 %s22, %s34
      %s36 = ssub.s32 %s23, %s30
      %s37 = sor.u32 %s35, %s36
      %p38 = scmp.eq.s32.totalorder %s37, 0
      %s40 = sadd.s32 %s39, 1
      %s41 = scalar_select %p38, %s39, %s40
      %p44 = pneg %p38
      %p45 = scmp.eq.s32.totalorder %s15, 2
      %p46 = por %p44, %p45
      %p47 = scmp.ne.s32.totalorder %s39, %s42
      %p48 = scmp.eq.s32.totalorder %s15, 0
      %p49 = por %p47, %p48
      %p50 = scmp.ne.s32.totalorder %s39, %s42
      %p51 = scmp.eq.s32.totalorder %s20, 2
      %p52 = por %p50, %p51
      %p53 = scmp.ne.s32.totalorder %s42, %s43
      %p54 = scmp.eq.s32.totalorder %s20, 0
      %p55 = por %p53, %p54
      %p56 = scmp.ne.s32.totalorder %s42, %s43
      %p57 = scmp.eq.s32.totalorder %s21, 2
      %p58 = por %p56, %p57
      %p60 = scmp.ne.s32.totalorder %s43, %s59
      %p61 = scmp.eq.s32.totalorder %s21, 0
      %p62 = por %p60, %p61
      %s63 = ssub.s32 %s22, %s34
      %p64 = scmp.eq.s32.totalorder %s63, 0
      %s66 = sadd.s32 %s65, 1
      %s67 = scalar_select %p64, %s65, %s66
      %p70 = pneg %p64
      %p71 = scmp.eq.s32.totalorder %s15, 2
      %p72 = por %p70, %p71
      %p73 = scmp.ne.s32.totalorder %s65, %s68
      %p74 = scmp.eq.s32.totalorder %s15, 0
      %p75 = por %p73, %p74
      %p76 = scmp.ne.s32.totalorder %s65, %s68
      %p77 = scmp.eq.s32.totalorder %s20, 2
      %p78 = por %p76, %p77
      %p79 = scmp.ne.s32.totalorder %s68, %s69
      %p80 = scmp.eq.s32.totalorder %s20, 0
      %p81 = por %p79, %p80
      %p82 = scmp.ne.s32.totalorder %s68, %s69
      %p83 = scmp.eq.s32.totalorder %s21, 2
      %p84 = por %p82, %p83
      %p86 = scmp.ne.s32.totalorder %s69, %s85
      %p87 = scmp.eq.s32.totalorder %s21, 0
      %p88 = por %p86, %p87
      %s90 = sadd.s32 %s89, 1
      %p93 = scmp.eq.s32.totalorder %s15, 2
      %p94 = scmp.ne.s32.totalorder %s89, %s91
      %p95 = scmp.eq.s32.totalorder %s15, 0
      %p96 = por %p94, %p95
      %p97 = scmp.ne.s32.totalorder %s89, %s91
      %p98 = scmp.eq.s32.totalorder %s20, 2
      %p99 = por %p97, %p98
      %p100 = scmp.ne.s32.totalorder %s91, %s92
      %p101 = scmp.eq.s32.totalorder %s20, 0
      %p102 = por %p100, %p101
      %p103 = scmp.ne.s32.totalorder %s91, %s92
      %p104 = scmp.eq.s32.totalorder %s21, 2
      %p105 = por %p103, %p104
      %p107 = scmp.ne.s32.totalorder %s92, %s106
      %p108 = scmp.eq.s32.totalorder %s21, 0
      %p109 = por %p107, %p108
      %s111 = sadd.s32 %s110, 1
      %p114 = scmp.eq.s32.totalorder %s15, 2
      %p115 = scmp.ne.s32.totalorder %s110, %s112
      %p116 = scmp.eq.s32.totalorder %s15, 0
      %p117 = por %p115, %p116
      %p118 = scmp.ne.s32.totalorder %s110, %s112
      %p119 = scmp.eq.s32.totalorder %s20, 2
      %p120 = por %p118, %p119
      %p121 = scmp.ne.s32.totalorder %s112, %s113
      %p122 = scmp.eq.s32.totalorder %s20, 0
      %p123 = por %p121, %p122
      %p124 = scmp.ne.s32.totalorder %s112, %s113
      %p125 = scmp.eq.s32.totalorder %s21, 2
      %p126 = por %p124, %p125
      %p128 = scmp.ne.s32.totalorder %s113, %s127
      %p129 = scmp.eq.s32.totalorder %s21, 0
      %p130 = por %p128, %p129
      %s131 = ssub.s32 %s22, %s34
      %p132 = scmp.eq.s32.totalorder %s131, 0
      %s134 = sadd.s32 %s133, 1
      %s135 = scalar_select %p132, %s133, %s134
      %p138 = pneg %p132
      %p139 = scmp.eq.s32.totalorder %s15, 2
      %p140 = por %p138, %p139
      %p141 = scmp.ne.s32.totalorder %s133, %s136
      %p142 = scmp.eq.s32.totalorder %s15, 0
      %p143 = por %p141, %p142
      %p144 = scmp.ne.s32.totalorder %s133, %s136
      %p145 = scmp.eq.s32.totalorder %s20, 2
      %p146 = por %p144, %p145
      %p147 = scmp.ne.s32.totalorder %s136, %s137
      %p148 = scmp.eq.s32.totalorder %s20, 0
      %p149 = por %p147, %p148
      %p150 = scmp.ne.s32.totalorder %s136, %s137
      %p151 = scmp.eq.s32.totalorder %s21, 2
      %p152 = por %p150, %p151
      %p154 = scmp.ne.s32.totalorder %s137, %s153
      %p155 = scmp.eq.s32.totalorder %s21, 0
      %p156 = por %p154, %p155
      %p157 = scmp.le.s32.totalorder 1, %s15
      %p158 = scmp.lt.s32.totalorder %s15, 4
      %p159 = pnand %p157, %p158
      %p160 = pneg %p159
      // Predicated region
      $region9: #{tpu_custom_call.1} parent=5 // pred_check
        _
      $region10: #{tpu_custom_call.1} parent=5 // pred_check_branch
        %162 = sbr.rel (%p159) target = $region12
      $region11: #{tpu_custom_call.1} parent=5 // pred_region
        %s163 = ssub.s32 %s15, 1
        // Predicated region
        $region13: #{tpu_custom_call.1} parent=11 // pred_check
          %p164 = pneg %p81
        $region14: #{tpu_custom_call.1} parent=11 // pred_check_branch
          %166 = sbr.rel (%p164) target = $region16
        $region15: #{tpu_custom_call.1} parent=11 // pred_region
          %p167 = scmp.lt.s32.totalorder %s24, 0
          %s168 = scalar_select %p167, %s24, 0
          %s169 = smul.addr %s168, 8
          %s170 = scalar_lea.vmem %s1, %s169
        $region16: #{tpu_custom_call.1} parent=11 // pred_fallthru
          _
        // Predicated region
        $region17: #{tpu_custom_call.1} parent=11 // pred_check
          %p171 = pneg %p102
        $region18: #{tpu_custom_call.1} parent=11 // pred_check_branch
          %173 = sbr.rel (%p171) target = $region20
        $region19: #{tpu_custom_call.1} parent=11 // pred_region
          %175 = vsyncadd [#allocation7], 0
          %s176 = sshll.u32 %s2, 4
          %s177 = int_to_ptr.hbm [resolvable:$true] %s176
          %s178 = sshll.u32 [#allocation6], 4
          %s179 = int_to_ptr.vmem [resolvable:$true] %s178
          %184 = dma.hbm_to_vmem [thread:$0]  %s177, 512, %s179, [#allocation7], 128, 128, 8
        $region20: #{tpu_custom_call.1} parent=11 // pred_fallthru
          _
        // Predicated region
        $region21: #{tpu_custom_call.1} parent=11 // pred_check
          %p185 = pneg %p123
        $region22: #{tpu_custom_call.1} parent=11 // pred_check_branch
          %187 = sbr.rel (%p185) target = $region24
        $region23: #{tpu_custom_call.1} parent=11 // pred_region
          _
        $region24: #{tpu_custom_call.1} parent=11 // pred_fallthru
          _
      $region12: #{tpu_custom_call.1} parent=5 // pred_fallthru
        _
      %p188 = scmp.lt.s32.totalorder %s15, 3
      // Predicated region
      $region25: #{tpu_custom_call.1} parent=5 // pred_check
        %p189 = pneg %p188
      $region26: #{tpu_custom_call.1} parent=5 // pred_check_branch
        %191 = sbr.rel (%p189) target = $region28
      $region27: #{tpu_custom_call.1} parent=5 // pred_region
        // Predicated region
        $region29: #{tpu_custom_call.1} parent=27 // pred_check
          %p192 = pneg %p49
        $region30: #{tpu_custom_call.1} parent=27 // pred_check_branch
          %194 = sbr.rel (%p192) target = $region32
        $region31: #{tpu_custom_call.1} parent=27 // pred_region
          %s195 = sand.u32 %s39, 1
          %s196 = scalar_lea.sflag [#allocation4], %s195
          %s197 = sand.u32 %s39, 1
          %s198 = smul.addr %s197, 64
          %s199 = scalar_lea.vmem [#allocation3], %s198
          %s200 = smul.u32 8, %s22
          %202 = vsyncadd %s196, 0
          %s203 = smul.addr %s200, 3
          %s204 = sadd.s32 %s23, %s203
          %s205 = smul.addr %s204, 8
          %s206 = scalar_lea.hbm %s0, %s205
          %s207 = sshll.u32 %s206, 4
          %s208 = int_to_ptr.hbm [resolvable:$true] %s207
          %s209 = sshll.u32 %s199, 4
          %s210 = int_to_ptr.vmem [resolvable:$true] %s209
          %215 = dma.hbm_to_vmem [thread:$0]  %s208, 1024, %s210, %s196, 384, 128, 8
        $region32: #{tpu_custom_call.1} parent=27 // pred_fallthru
          _
      $region28: #{tpu_custom_call.1} parent=5 // pred_fallthru
        _
      %p216 = scmp.le.s32.totalorder 1, %s15
      %p217 = scmp.lt.s32.totalorder %s15, 4
      %p218 = pnand %p216, %p217
      %p219 = pneg %p218
      // Predicated region
      $region33: #{tpu_custom_call.1} parent=5 // pred_check
        _
      $region34: #{tpu_custom_call.1} parent=5 // pred_check_branch
        %221 = sbr.rel (%p218) target = $region36
      $region35: #{tpu_custom_call.1} parent=5 // pred_region
        %s222 = ssub.s32 %s15, 1
        %s223 = sand.u32 %s42, 1
        %s224 = scalar_lea.sflag [#allocation4], %s223
        %s225 = sand.u32 %s42, 1
        %s226 = smul.addr %s225, 64
        %s227 = scalar_lea.vmem [#allocation3], %s226
        // Predicated region
        $region37: #{tpu_custom_call.1} parent=35 // pred_check
          %p228 = pneg %p55
        $region38: #{tpu_custom_call.1} parent=35 // pred_check_branch
          %230 = sbr.rel (%p228) target = $region40
        $region39: #{tpu_custom_call.1} parent=35 // pred_region
          %232 = dma.done %s224, 1024
        $region40: #{tpu_custom_call.1} parent=35 // pred_fallthru
          _
        // Predicated region
        $region41: #{tpu_custom_call.1} parent=35 // pred_check
          %p233 = pneg %p102
        $region42: #{tpu_custom_call.1} parent=35 // pred_check_branch
          %235 = sbr.rel (%p233) target = $region44
        $region43: #{tpu_custom_call.1} parent=35 // pred_region
          %237 = dma.done [#allocation7], 512
        $region44: #{tpu_custom_call.1} parent=35 // pred_fallthru
          _
        %s238 = sand.u32 %s42, 1
        %s239 = scalar_lea.sflag [#allocation4], %s238
        %s240 = sand.u32 %s42, 1
        %s241 = smul.addr %s240, 64
        %s242 = scalar_lea.vmem [#allocation3], %s241
        %p243 = pneg %p55
        %p244 = pneg %p52
        %p245 = scmp.lt.s32.totalorder %s24, 0
        %s246 = scalar_select %p245, %s24, 0
        %s247 = smul.addr %s246, 8
        %s248 = scalar_lea.vmem %s1, %s247
        %p249 = pneg %p81
        %p250 = pneg %p78
        %p251 = pneg %p102
        %p252 = pneg %p99
        %p253 = pneg %p123
        %p254 = pneg %p120
        %p255 = pneg %p149
        %p256 = pneg %p146
        %s257 = smul.u32 8, %s24
        %p258 = scmp.lt.s32.totalorder %s24, 0
        %s259 = scalar_select %p258, %s24, 0
        %s260 = smul.addr %s259, 8
        %s261 = scalar_lea.vmem %s1, %s260
        %p262 = scmp.eq.s32.totalorder %s25, 0
        // Predicated region
        $region45: #{tpu_custom_call.1} parent=35 // pred_check
          %p263 = pneg %p262
        $region46: #{tpu_custom_call.1} parent=35 // pred_check_branch
          %265 = sbr.rel (%p263) target = $region48
        $region47: #{tpu_custom_call.1} parent=35 // pred_region
          %vm266 = vcmask 261120
          %267 = vst.msk [vmem:[#allocation2] sm:$0xff] %vm266, 0.0
        $region48: #{tpu_custom_call.1} parent=35 // pred_fallthru
          _
        %v268 = vld [vmem:[#allocation2] sm:$0xff]
        %v269 = vld [vmem:[%s227] sm:$0xff]
        %v270 = vld [vmem:[%s227 + $0x8] sm:$0xff]
        %v271 = vld [vmem:[%s227 + $0x10] sm:$0xff]
        %v272 = vld [vmem:[%s227 + $0x18] sm:$0xff]
        %v273 = vld [vmem:[%s227 + $0x20] sm:$0xff]
        %v274 = vld [vmem:[%s227 + $0x28] sm:$0xff]
        %v275 = vld [vmem:[%s227 + $0x30] sm:$0xff]
        %v276 = vld [vmem:[%s227 + $0x38] sm:$0xff]
        %vm277 = vcmask 261120
        %v278 = vsel %vm277, %v269, 0.0
        %v279 = vrot.slane %v278, 4
        %v280 = vadd.f32 %v278, %v279
        %v281 = vrot.slane %v280, 2
        %v282 = vadd.f32 %v280, %v281
        %v283 = vrot.slane %v282, 1
        %v284 = vadd.f32 %v282, %v283
        %v285 = vsel %vm277, %v270, 0.0
        %v286 = vrot.slane %v285, 4
        %v287 = vadd.f32 %v285, %v286
        %v288 = vrot.slane %v287, 2
        %v289 = vadd.f32 %v287, %v288
        %v290 = vrot.slane %v289, 1
        %v291 = vadd.f32 %v289, %v290
        %v292 = vsel %vm277, %v271, 0.0
        %v293 = vrot.slane %v292, 4
        %v294 = vadd.f32 %v292, %v293
        %v295 = vrot.slane %v294, 2
        %v296 = vadd.f32 %v294, %v295
        %v297 = vrot.slane %v296, 1
        %v298 = vadd.f32 %v296, %v297
        %v299 = vsel %vm277, %v272, 0.0
        %v300 = vrot.slane %v299, 4
        %v301 = vadd.f32 %v299, %v300
        %v302 = vrot.slane %v301, 2
        %v303 = vadd.f32 %v301, %v302
        %v304 = vrot.slane %v303, 1
        %v305 = vadd.f32 %v303, %v304
        %v306 = vsel %vm277, %v273, 0.0
        %v307 = vrot.slane %v306, 4
        %v308 = vadd.f32 %v306, %v307
        %v309 = vrot.slane %v308, 2
        %v310 = vadd.f32 %v308, %v309
        %v311 = vrot.slane %v310, 1
        %v312 = vadd.f32 %v310, %v311
        %v313 = vsel %vm277, %v274, 0.0
        %v314 = vrot.slane %v313, 4
        %v315 = vadd.f32 %v313, %v314
        %v316 = vrot.slane %v315, 2
        %v317 = vadd.f32 %v315, %v316
        %v318 = vrot.slane %v317, 1
        %v319 = vadd.f32 %v317, %v318
        %v320 = vsel %vm277, %v275, 0.0
        %v321 = vrot.slane %v320, 4
        %v322 = vadd.f32 %v320, %v321
        %v323 = vrot.slane %v322, 2
        %v324 = vadd.f32 %v322, %v323
        %v325 = vrot.slane %v324, 1
        %v326 = vadd.f32 %v324, %v325
        %v327 = vsel %vm277, %v276, 0.0
        %v328 = vrot.slane %v327, 4
        %v329 = vadd.f32 %v327, %v328
        %v330 = vrot.slane %v329, 2
        %v331 = vadd.f32 %v329, %v330
        %v332 = vrot.slane %v331, 1
        %v333 = vadd.f32 %v331, %v332
        %vm342 = vcmask 1041409
        %v343 = vsel %vm342, %v291, %v284
        %vm344 = vcmask 1042434
        %v345 = vsel %vm344, %v298, %v343
        %vm346 = vcmask 1043459
        %v347 = vsel %vm346, %v305, %v345
        %vm348 = vcmask 1044484
        %v349 = vsel %vm348, %v312, %v347
        %vm350 = vcmask 1045509
        %v351 = vsel %vm350, %v319, %v349
        %vm352 = vcmask 1046534
        %v353 = vsel %vm352, %v326, %v351
        %vm354 = vcmask 1047559
        %v355 = vsel %vm354, %v333, %v353
        %v357 = vadd.f32 %v268, %v355
        %358 = vst.msk [vmem:[#allocation2] sm:$0xff] %vm277, %v357
        %p359 = scmp.eq.s32.totalorder %s25, 2
        // Predicated region
        $region49: #{tpu_custom_call.1} parent=35 // pred_check
          %p360 = pneg %p359
        $region50: #{tpu_custom_call.1} parent=35 // pred_check_branch
          %362 = sbr.rel (%p360) target = $region52
        $region51: #{tpu_custom_call.1} parent=35 // pred_region
          %v363 = vld [vmem:[#allocation2] sm:$0xff]
          %v364 = vld [vmem:[%s261] sm:$0xff]
          %366 = vset.pattern.permute.xlu0 0
          %367 = vperm.xlu0 %366, %v364
          %v368 = vpop.permute.xlu0 %367
          %v370 = vrcp.pop %v368
          %v371 = vmul.f32 %v368, %v370
          %v372 = vsub.f32 1.0, %v371
          %v373 = vmul.f32 %v370, %v372
          %v374 = vadd.f32 %v370, %v373
          %vm375 = vweird.f32 %v368
          %vm376 = vweird.f32 %v370
          %vm377 = vmor %vm375, %vm376
          %v378 = vsel %vm377, %v370, %v374
          %v379 = vand.u32 2147483647, %v368
          %vm380 = vcmp.eq.f32.partialorder %v379, 8.507059e+37
          %v381 = vand.u32 %v368, 2147483648
          %v382 = vor.u32 1.1754944e-38, %v381
          %v383 = vsel %vm380, %v382, %v378
          %v384 = vmul.f32 %v363, %v383
          %v385 = vld [vmem:[#allocation6] sm:$0xff]
          %v386 = vld [vmem:[#allocation6 + $0x8] sm:$0xff]
          %v387 = vld [vmem:[#allocation6 + $0x10] sm:$0xff]
          %v388 = vld [vmem:[#allocation6 + $0x18] sm:$0xff]
          %v389 = vld [vmem:[%s3] sm:$0x1]
          %v391 = vperm.slane %v389, 0
          %v394 = vsel %vm277, %v384, 0
          %396 = vmatpush.msra.mxu0 0.0
          %397 = vmatpush.msra.mxu0 0.0
          %398 = vmatpush.msra.mxu0 0.0
          %399 = vmatpush.msra.mxu0 0.0
          %400 = vmatpush.msra.mxu0 0.0
          %401 = vmatpush.msra.mxu0 0.0
          %402 = vmatpush.msra.mxu0 0.0
          %403 = vmatpush.msra.mxu0 0.0
          %404 = vmatpush.msra.mxu0 0.0
          %405 = vmatpush.msra.mxu0 0.0
          %406 = vmatpush.msra.mxu0 0.0
          %407 = vmatpush.msra.mxu0 0.0
          %408 = vmatpush.msra.mxu0 %v388
          %409 = vmatpush.msra.mxu0 %v387
          %410 = vmatpush.msra.mxu0 %v386
          %411 = vmatpush.msra.mxu0 %v385
          %412 = vmatmul.f32.gmra.mxu0 %v394
          %v413 = vpop.f32.mrf.mxu0
          %v414 = vadd.f32 %v391, %v413
          %415 = vdwg.mxu0
          %416 = vst [vmem:[#allocation8] sm:$0xff] %v414
        $region52: #{tpu_custom_call.1} parent=35 // pred_fallthru
          _
        // Predicated region
        $region53: #{tpu_custom_call.1} parent=35 // pred_check
          %p417 = pneg %p146
        $region54: #{tpu_custom_call.1} parent=35 // pred_check_branch
          %419 = sbr.rel (%p417) target = $region56
        $region55: #{tpu_custom_call.1} parent=35 // pred_region
          %421 = vsyncadd [#allocation5], 0
          %s422 = smul.addr %s24, 8
          %s423 = scalar_lea.hbm %s4, %s422
          %s425 = sshll.u32 [#allocation8], 4
          %s426 = int_to_ptr.vmem [resolvable:$true] %s425
          %s427 = sshll.u32 %s423, 4
          %s428 = int_to_ptr.hbm [resolvable:$true] %s427
          %430 = dma.vmem_to_hbm [thread:$0]  %s426, 128, %s428, [#allocation5]
        $region56: #{tpu_custom_call.1} parent=35 // pred_fallthru
          _
        // Predicated region
        $region57: #{tpu_custom_call.1} parent=35 // pred_check
          %p431 = pneg %p146
        $region58: #{tpu_custom_call.1} parent=35 // pred_check_branch
          %433 = sbr.rel (%p431) target = $region60
        $region59: #{tpu_custom_call.1} parent=35 // pred_region
          %435 = dma.done [#allocation5], 128
        $region60: #{tpu_custom_call.1} parent=35 // pred_fallthru
          _
      $region36: #{tpu_custom_call.1} parent=5 // pred_fallthru
        _
      %p436 = scmp.le.s32.totalorder 2, %s15
      // Predicated region
      $region61: #{tpu_custom_call.1} parent=5 // pred_check
        %p437 = pneg %p436
      $region62: #{tpu_custom_call.1} parent=5 // pred_check_branch
        %439 = sbr.rel (%p437) target = $region64
      $region63: #{tpu_custom_call.1} parent=5 // pred_region
        %s440 = ssub.s32 %s15, 2
      $region64: #{tpu_custom_call.1} parent=5 // pred_fallthru
        _
    $region6: #{tpu_custom_call.1} parent=1 // loop_footer
      %s19 = sadd.s32 1, %s15
    $region7: #{tpu_custom_call.1} parent=1 // loop_footer_branch
      %14 = sbr.rel target = $region3
    $region8: #{tpu_custom_call.1} parent=1 // loop_exit
      _
    %441 = vsyncpa [#allocation4], 1
    %s442 = scalar_lea.sflag [#allocation4], 1
    %443 = vsyncpa %s442, 1
    %444 = vsyncpa [#allocation7], 1
    %445 = vsyncpa [#allocation5], 1
    %s446 = scalar_lea.sflag [#allocation5], 1
    %447 = vsyncpa %s446, 1

</llo_original>
